<compile_context>
chip_gen: v7x
topology: tpu7x:2x2x1
jax: 0.10.0
libtpu: 0.0.40
codegen_flags: <defaults>
</compile_context>

<pallas_src>
import functools

import jax
import jax.numpy as jnp
from jax.experimental import pallas as pl
from jax.experimental.pallas import tpu as pltpu

HIDDEN = 128
SUBLANE = 8


def _cdiv(a, b):
    return (a + b - 1) // b


def _round_up(n, m):
    return _cdiv(n, m) * m


def _crosscoder_kernel(x_ref, w1_ref, b1_ref, w2_ref, b2_ref, o_ref, *, compute_dtype):
    # x tile -> optional in-kernel cast for the bf16 MXU path (no wrapper copy).
    x = x_ref[...]
    if x.dtype != compute_dtype:
        x = x.astype(compute_dtype)
    # fc1: (TB, D_in) @ (D_in, H) -> f32 accumulator, bias + ReLU fused (f32).
    h = jnp.dot(x, w1_ref[...], preferred_element_type=jnp.float32)
    h = jnp.maximum(h + b1_ref[...], 0.0)                    # (1,H) broadcasts
    # fc2: (TB, H) @ (H, D_out) -> f32 accumulator, bias fused into the store.
    y = jnp.dot(h.astype(w2_ref.dtype), w2_ref[...],
                preferred_element_type=jnp.float32)
    o_ref[...] = (y + b2_ref[...]).astype(o_ref.dtype)


def crosscoder_forward(x, w1, b1, w2, b2, *, block_b=1024, compute_dtype=None,
                       out_dtype=None):
    """Fused CrossCoder forward.

    x:  (B, D_in)
    w1: (D_in, H)        b1: (H,) or (1, H)
    w2: (H, D_out)       b2: (D_out,) or (1, D_out)
    Returns (B, D_out) in `out_dtype` (default: x.dtype).
    """
    B, D_in = x.shape
    Hdim, D_out = w2.shape
    assert w1.shape == (D_in, Hdim) and Hdim == HIDDEN

    out_dtype = x.dtype if out_dtype is None else jnp.dtype(out_dtype)
    cdt = jnp.dtype(x.dtype) if compute_dtype is None else jnp.dtype(compute_dtype)

    # Weights: tiny one-time cast (no wrapper cast of the large x stream).
    w1c = w1.astype(cdt)
    w2c = w2.astype(cdt)
    b1c = jnp.asarray(b1, jnp.float32).reshape(1, Hdim)
    b2c = jnp.asarray(b2, jnp.float32).reshape(1, D_out)

    x_item = jnp.dtype(x.dtype).itemsize
    w_item = jnp.dtype(cdt).itemsize
    o_item = jnp.dtype(out_dtype).itemsize

    # --- per-generation VMEM budget --------------------------------------
    try:
        vmem_cap = int(pltpu.get_tpu_info().vmem_capacity_bytes)
    except Exception:
        vmem_cap = 64 << 20            # conservative (v7x-sized) fallback
    budget = int(vmem_cap * 0.8)       # ~100 MiB on v5e/v6e, ~51 MiB on v7x
    vmem_limit = max(32 << 20, budget)

    # Resident (single-buffered) weights + f32 biases.
    weight_bytes = (D_in * Hdim + Hdim * D_out) * w_item + (Hdim + D_out) * 4
    # Per batch-row VMEM: double-buffered x/out tiles + f32 temporaries
    # (+ in-kernel cast copies on the bf16 path).
    per_row = (2 * D_in * x_item + 2 * D_out * o_item + 4 * Hdim + 4 * D_out
               + ((D_in + Hdim) * w_item if cdt != jnp.dtype(x.dtype) else 0))

    # Conservative: assume weights might still double-buffer when deriving TB.
    avail = budget - 2 * weight_bytes
    if avail < per_row * SUBLANE:
        # TODO(synk): for very large D_in/D_out (weights alone overflow VMEM,
        # mainly v7x with 64 MiB), add a second grid axis tiling D_out.
        avail = per_row * SUBLANE

    tb_cap = max(SUBLANE, (avail // per_row) // SUBLANE * SUBLANE)
    TB = min(block_b, tb_cap, _round_up(B, SUBLANE))
    TB = max(SUBLANE, (TB // SUBLANE) * SUBLANE)
    if TB >= 256:
        TB = (TB // 256) * 256         # keep MXU M-dim 256-aligned (v6e/v7x)

    # v7x megacore: prefer >= 2 grid steps so both TensorCores get work.
    n_tiles = _cdiv(B, TB)
    while n_tiles < 2 and TB > SUBLANE:
        TB = _round_up(TB // 2, SUBLANE)
        n_tiles = _cdiv(B, TB)

    cost = pl.CostEstimate(
        flops=2 * B * D_in * Hdim + 2 * B * Hdim * D_out,
        transcendentals=0,
        bytes_accessed=(B * D_in * x_item
                        + (D_in * Hdim + Hdim * D_out) * w_item
                        + (Hdim + D_out) * 4
                        + B * D_out * o_item),
    )

    kernel = functools.partial(_crosscoder_kernel, compute_dtype=cdt)

    def build(single_buffer_weights):
        resident = ({"pipeline_mode": pl.Buffered(1)}
                    if single_buffer_weights else {})
        return pl.pallas_call(
            kernel,
            out_shape=jax.ShapeDtypeStruct((B, D_out), out_dtype),
            grid_spec=pltpu.PrefetchScalarGridSpec(
                num_scalar_prefetch=0,
                grid=(n_tiles,),
                in_specs=[
                    pl.BlockSpec((TB, D_in), lambda i: (i, 0)),               # x tile
                    pl.BlockSpec((D_in, Hdim), lambda i: (0, 0), **resident),  # w1 resident
                    pl.BlockSpec((1, Hdim), lambda i: (0, 0), **resident),     # b1 resident
                    pl.BlockSpec((Hdim, D_out), lambda i: (0, 0), **resident),  # w2 resident
                    pl.BlockSpec((1, D_out), lambda i: (0, 0), **resident),     # b2 resident
                ],
                out_specs=pl.BlockSpec((TB, D_out), lambda i: (i, 0)),
            ),
            compiler_params=pltpu.CompilerParams(
                dimension_semantics=("parallel",),
                vmem_limit_bytes=vmem_limit,
            ),
            cost_estimate=cost,
        )

    try:
        return build(True)(x, w1c, b1c, w2c, b2c)
    except Exception:
        # pipeline_mode=pl.Buffered(1) not supported -> default double-buffering.
        return build(False)(x, w1c, b1c, w2c, b2c)


def init_params(key, input_dim, output_dim, hidden=HIDDEN, dtype=jnp.float32):
    """Deterministic init mirroring nn.Linear's U(-1/sqrt(fan_in), 1/sqrt(fan_in))."""
    k1, k2, k3, k4 = jax.random.split(key, 4)
    bound1 = 1.0 / jnp.sqrt(input_dim)
    bound2 = 1.0 / jnp.sqrt(hidden)
    # stored transposed relative to PyTorch's (out, in) weight layout
    w1 = jax.random.uniform(k1, (input_dim, hidden), dtype, -bound1, bound1)
    b1 = jax.random.uniform(k2, (1, hidden), dtype, -bound1, bound1)
    w2 = jax.random.uniform(k3, (hidden, output_dim), dtype, -bound2, bound2)
    b2 = jax.random.uniform(k4, (1, output_dim), dtype, -bound2, bound2)
    return w1, b1, w2, b2


def reference_forward(x, w1, b1, w2, b2):
    h = jnp.maximum(x @ w1 + b1, 0.0)
    return h @ w2 + b2


if __name__ == "__main__":
    key = jax.random.PRNGKey(0)
    kx, kp, kx2 = jax.random.split(key, 3)

    B, input_dim, output_dim = 8, 32, 16
    x = jax.random.normal(kx, (B, input_dim), jnp.float32)
    w1, b1, w2, b2 = init_params(kp, input_dim, output_dim)

    ref = reference_forward(x, w1, b1, w2, b2)

    # f32 compute path: must match the f32 reference tightly.
    out = crosscoder_forward(x, w1, b1, w2, b2)
    out = jax.block_until_ready(out)
    assert out.shape == (B, output_dim)
    assert jnp.allclose(out, ref, atol=1e-5, rtol=1e-5), "f32 mismatch vs reference"

    # bf16 MXU path (f32 accumulation, in-kernel cast): looser tolerance.
    out_bf16 = crosscoder_forward(x, w1, b1, w2, b2, compute_dtype=jnp.bfloat16)
    out_bf16 = jax.block_until_ready(out_bf16)
    assert out_bf16.shape == (B, output_dim)
    assert jnp.allclose(out_bf16, ref, atol=5e-2, rtol=5e-2), "bf16 mismatch vs reference"

    # Ragged batch (B not a multiple of the tile): exercises the masked last block.
    B2 = 10
    x2 = jax.random.normal(kx2, (B2, input_dim), jnp.float32)
    ref2 = reference_forward(x2, w1, b1, w2, b2)
    out2 = jax.block_until_ready(crosscoder_forward(x2, w1, b1, w2, b2))
    assert out2.shape == (B2, output_dim)
    assert jnp.allclose(out2, ref2, atol=1e-5, rtol=1e-5), "ragged-batch mismatch"

    print("KERNEL_OK")
</pallas_src>

<mosaic_0001>
module attributes {stable_mosaic.version = 11 : i64} {
  func.func @_crosscoder_kernel(%arg0: i32, %arg1: memref<8x32xf32, #tpu.memory_space<vmem>>, %arg2: memref<32x128xf32, #tpu.memory_space<vmem>>, %arg3: memref<1x128xf32, #tpu.memory_space<vmem>>, %arg4: memref<128x16xf32, #tpu.memory_space<vmem>>, %arg5: memref<1x16xf32, #tpu.memory_space<vmem>>, %arg6: memref<8x16xf32, #tpu.memory_space<vmem>>) attributes {dimension_semantics = [#tpu.dimension_semantics<parallel>], iteration_bounds = array<i64: 1>, scalar_prefetch = 0 : i64, scratch_operands = 0 : i64, tpu.core_type = #tpu.core_type<tc>, window_params = [{transform_indices = @transform_0, window_bounds = array<i64: 8, 32>}, {pipeline_mode = #tpu.pipeline_mode<synchronous>, transform_indices = @transform_1, window_bounds = array<i64: 32, 128>}, {pipeline_mode = #tpu.pipeline_mode<synchronous>, transform_indices = @transform_2, window_bounds = array<i64: 1, 128>}, {pipeline_mode = #tpu.pipeline_mode<synchronous>, transform_indices = @transform_3, window_bounds = array<i64: 128, 16>}, {pipeline_mode = #tpu.pipeline_mode<synchronous>, transform_indices = @transform_4, window_bounds = array<i64: 1, 16>}, {transform_indices = @transform_5, window_bounds = array<i64: 8, 16>}]} {
    %c0 = arith.constant 0 : index
    %c0_0 = arith.constant 0 : index
    %0 = vector.load %arg1[%c0, %c0_0] : memref<8x32xf32, #tpu.memory_space<vmem>>, vector<8x32xf32>
    %c0_1 = arith.constant 0 : index
    %c0_2 = arith.constant 0 : index
    %1 = vector.load %arg2[%c0_1, %c0_2] : memref<32x128xf32, #tpu.memory_space<vmem>>, vector<32x128xf32>
    %cst = arith.constant dense<0.000000e+00> : vector<8x128xf32>
    %2 = tpu.matmul %0, %1, %cst {dimension_numbers = #tpu.dot_dimension_numbers<[1], [0], [0], [1], [0, 0, 1, 1], [], []>} : vector<8x32xf32>, vector<32x128xf32>, vector<8x128xf32> -> vector<8x128xf32>
    %c0_3 = arith.constant 0 : index
    %c0_4 = arith.constant 0 : index
    %3 = vector.load %arg3[%c0_3, %c0_4] : memref<1x128xf32, #tpu.memory_space<vmem>>, vector<1x128xf32>
    %4 = vector.broadcast %3 : vector<1x128xf32> to vector<8x128xf32>
    %5 = arith.addf %2, %4 : vector<8x128xf32>
    %cst_5 = arith.constant 0.000000e+00 : f32
    %6 = vector.broadcast %cst_5 : f32 to vector<8x128xf32>
    %7 = arith.maximumf %5, %6 : vector<8x128xf32>
    %c0_6 = arith.constant 0 : index
    %c0_7 = arith.constant 0 : index
    %8 = vector.load %arg4[%c0_6, %c0_7] : memref<128x16xf32, #tpu.memory_space<vmem>>, vector<128x16xf32>
    %cst_8 = arith.constant dense<0.000000e+00> : vector<8x16xf32>
    %9 = tpu.matmul %7, %8, %cst_8 {dimension_numbers = #tpu.dot_dimension_numbers<[1], [0], [0], [1], [0, 0, 1, 1], [], []>} : vector<8x128xf32>, vector<128x16xf32>, vector<8x16xf32> -> vector<8x16xf32>
    %c0_9 = arith.constant 0 : index
    %c0_10 = arith.constant 0 : index
    %10 = vector.load %arg5[%c0_9, %c0_10] : memref<1x16xf32, #tpu.memory_space<vmem>>, vector<1x16xf32>
    %11 = vector.broadcast %10 : vector<1x16xf32> to vector<8x16xf32>
    %12 = arith.addf %9, %11 : vector<8x16xf32>
    %c0_11 = arith.constant 0 : index
    %c0_12 = arith.constant 0 : index
    %13 = vector.load %arg6[%c0_11, %c0_12] : memref<8x16xf32, #tpu.memory_space<vmem>>, vector<8x16xf32>
    tpu.vector_store %arg6[%c0_11, %c0_12], %12 {strides = array<i32>} : memref<8x16xf32, #tpu.memory_space<vmem>>, vector<8x16xf32>,
    return
  }
  func.func @transform_0(%arg0: i32) -> (i32, i32) {
    %c0_i32 = arith.constant 0 : i32
    %c0_i32_0 = arith.constant 0 : i32
    return %arg0, %c0_i32 : i32, i32
  }
  func.func @transform_1(%arg0: i32) -> (i32, i32) {
    %c0_i32 = arith.constant 0 : i32
    %c0_i32_0 = arith.constant 0 : i32
    %c0_i32_1 = arith.constant 0 : i32
    return %c0_i32, %c0_i32_0 : i32, i32
  }
  func.func @transform_2(%arg0: i32) -> (i32, i32) {
    %c0_i32 = arith.constant 0 : i32
    %c0_i32_0 = arith.constant 0 : i32
    %c0_i32_1 = arith.constant 0 : i32
    return %c0_i32, %c0_i32_0 : i32, i32
  }
  func.func @transform_3(%arg0: i32) -> (i32, i32) {
    %c0_i32 = arith.constant 0 : i32
    %c0_i32_0 = arith.constant 0 : i32
    %c0_i32_1 = arith.constant 0 : i32
    return %c0_i32, %c0_i32_0 : i32, i32
  }
  func.func @transform_4(%arg0: i32) -> (i32, i32) {
    %c0_i32 = arith.constant 0 : i32
    %c0_i32_0 = arith.constant 0 : i32
    %c0_i32_1 = arith.constant 0 : i32
    return %c0_i32, %c0_i32_0 : i32, i32
  }
  func.func @transform_5(%arg0: i32) -> (i32, i32) {
    %c0_i32 = arith.constant 0 : i32
    %c0_i32_0 = arith.constant 0 : i32
    return %arg0, %c0_i32 : i32, i32
  }
}

module attributes {stable_mosaic.version = 11 : i64} {
  func.func @_crosscoder_kernel(%arg0: i32, %arg1: memref<8x32xf32, #tpu.memory_space<vmem>>, %arg2: memref<32x128xf32, #tpu.memory_space<vmem>>, %arg3: memref<1x128xf32, #tpu.memory_space<vmem>>, %arg4: memref<128x16xf32, #tpu.memory_space<vmem>>, %arg5: memref<1x16xf32, #tpu.memory_space<vmem>>, %arg6: memref<8x16xf32, #tpu.memory_space<vmem>>) attributes {dimension_semantics = [#tpu.dimension_semantics<parallel>], iteration_bounds = array<i64: 1>, scalar_prefetch = 0 : i64, scratch_operands = 0 : i64, tpu.core_type = #tpu.core_type<tc>, window_params = [{transform_indices = @transform_0, window_bounds = array<i64: 8, 32>}, {pipeline_mode = #tpu.pipeline_mode<synchronous>, transform_indices = @transform_1, window_bounds = array<i64: 32, 128>}, {pipeline_mode = #tpu.pipeline_mode<synchronous>, transform_indices = @transform_2, window_bounds = array<i64: 1, 128>}, {pipeline_mode = #tpu.pipeline_mode<synchronous>, transform_indices = @transform_3, window_bounds = array<i64: 128, 16>}, {pipeline_mode = #tpu.pipeline_mode<synchronous>, transform_indices = @transform_4, window_bounds = array<i64: 1, 16>}, {transform_indices = @transform_5, window_bounds = array<i64: 8, 16>}]} {
    %c0 = arith.constant 0 : index
    %c0_0 = arith.constant 0 : index
    %0 = vector.load %arg1[%c0, %c0_0] : memref<8x32xf32, #tpu.memory_space<vmem>>, vector<8x32xf32>
    %c0_1 = arith.constant 0 : index
    %c0_2 = arith.constant 0 : index
    %1 = vector.load %arg2[%c0_1, %c0_2] : memref<32x128xf32, #tpu.memory_space<vmem>>, vector<32x128xf32>
    %cst = arith.constant dense<0.000000e+00> : vector<8x128xf32>
    %2 = tpu.matmul %0, %1, %cst {dimension_numbers = #tpu.dot_dimension_numbers<[1], [0], [0], [1], [0, 0, 1, 1], [], []>} : vector<8x32xf32>, vector<32x128xf32>, vector<8x128xf32> -> vector<8x128xf32>
    %c0_3 = arith.constant 0 : index
    %c0_4 = arith.constant 0 : index
    %3 = vector.load %arg3[%c0_3, %c0_4] : memref<1x128xf32, #tpu.memory_space<vmem>>, vector<1x128xf32>
    %4 = vector.broadcast %3 : vector<1x128xf32> to vector<8x128xf32>
    %5 = arith.addf %2, %4 : vector<8x128xf32>
    %cst_5 = arith.constant 0.000000e+00 : f32
    %6 = vector.broadcast %cst_5 : f32 to vector<8x128xf32>
    %7 = arith.maximumf %5, %6 : vector<8x128xf32>
    %c0_6 = arith.constant 0 : index
    %c0_7 = arith.constant 0 : index
    %8 = vector.load %arg4[%c0_6, %c0_7] : memref<128x16xf32, #tpu.memory_space<vmem>>, vector<128x16xf32>
    %cst_8 = arith.constant dense<0.000000e+00> : vector<8x16xf32>
    %9 = tpu.matmul %7, %8, %cst_8 {dimension_numbers = #tpu.dot_dimension_numbers<[1], [0], [0], [1], [0, 0, 1, 1], [], []>} : vector<8x128xf32>, vector<128x16xf32>, vector<8x16xf32> -> vector<8x16xf32>
    %c0_9 = arith.constant 0 : index
    %c0_10 = arith.constant 0 : index
    %10 = vector.load %arg5[%c0_9, %c0_10] : memref<1x16xf32, #tpu.memory_space<vmem>>, vector<1x16xf32>
    %11 = vector.broadcast %10 : vector<1x16xf32> to vector<8x16xf32>
    %12 = arith.addf %9, %11 : vector<8x16xf32>
    %c0_11 = arith.constant 0 : index
    %c0_12 = arith.constant 0 : index
    %13 = vector.load %arg6[%c0_11, %c0_12] : memref<8x16xf32, #tpu.memory_space<vmem>>, vector<8x16xf32>
    tpu.vector_store %arg6[%c0_11, %c0_12], %12 {strides = array<i32>} : memref<8x16xf32, #tpu.memory_space<vmem>>, vector<8x16xf32>,
    return
  }
  func.func @transform_0(%arg0: i32) -> (i32, i32) {
    %c0_i32 = arith.constant 0 : i32
    %c0_i32_0 = arith.constant 0 : i32
    return %arg0, %c0_i32 : i32, i32
  }
  func.func @transform_1(%arg0: i32) -> (i32, i32) {
    %c0_i32 = arith.constant 0 : i32
    %c0_i32_0 = arith.constant 0 : i32
    %c0_i32_1 = arith.constant 0 : i32
    return %c0_i32, %c0_i32_0 : i32, i32
  }
  func.func @transform_2(%arg0: i32) -> (i32, i32) {
    %c0_i32 = arith.constant 0 : i32
    %c0_i32_0 = arith.constant 0 : i32
    %c0_i32_1 = arith.constant 0 : i32
    return %c0_i32, %c0_i32_0 : i32, i32
  }
  func.func @transform_3(%arg0: i32) -> (i32, i32) {
    %c0_i32 = arith.constant 0 : i32
    %c0_i32_0 = arith.constant 0 : i32
    %c0_i32_1 = arith.constant 0 : i32
    return %c0_i32, %c0_i32_0 : i32, i32
  }
  func.func @transform_4(%arg0: i32) -> (i32, i32) {
    %c0_i32 = arith.constant 0 : i32
    %c0_i32_0 = arith.constant 0 : i32
    %c0_i32_1 = arith.constant 0 : i32
    return %c0_i32, %c0_i32_0 : i32, i32
  }
  func.func @transform_5(%arg0: i32) -> (i32, i32) {
    %c0_i32 = arith.constant 0 : i32
    %c0_i32_0 = arith.constant 0 : i32
    return %arg0, %c0_i32 : i32, i32
  }
}

</mosaic_0001>

<llo_original>
// kernel: tpu_custom_call.1
$region0: #{tpu_custom_call.1}
  #allocation0 [shape = 'u32[]', space=smem, size = 0x4, offset = 0x4, fixed_abs, tag = 'smem constant byte address 0x4 - core index']
  #allocation1 [shape = 'u32[144,128]{1,0:T(1,128)}', space=vmem, size = 0x12000, scoped, tag = 'internal scratch']
  %s0 = inlined_call_operand.vmem [shape: f32[8,32], index: 0, kind: input, shape index: {}]
  %s1 = inlined_call_operand.vmem [shape: f32[32,128], index: 1, kind: input, shape index: {}]
  %s2 = inlined_call_operand.vmem [shape: f32[1,128], index: 2, kind: input, shape index: {}]
  %s3 = inlined_call_operand.vmem [shape: f32[128,16], index: 3, kind: input, shape index: {}]
  %s4 = inlined_call_operand.vmem [shape: f32[1,16], index: 4, kind: input, shape index: {}]
  %s5 = inlined_call_operand.hbm [shape: f32[8,16], index: 5, kind: output, shape index: {}]
  %s6 = sld [smem:[#allocation0]]
  $region30: #{tpu_custom_call.1} parent=0
    _
  %s8 = ssub.s32 1, %s6
  %s9 = scalar_select 0, %s8, %s6
  $region1: #{tpu_custom_call.1} parent=0
    #allocation2 [shape = 'u8[4096]{0}', space=vmem, size = 0x1000, scoped, tag = 'output window, operand 0, single buffered']
    #allocation3 [shape = 's32[1]{0}', space=sflag, size = 0x4, scoped, tag = 'scoped memory for tpu_custom_call.1']
    %10 = vsyncpa [#allocation3], 0
    // Predicated region
    $region2: #{tpu_custom_call.1} parent=1 // pred_check
      _
    $region3: #{tpu_custom_call.1} parent=1 // pred_check_branch
      %12 = sbr.rel (0) target = $region5
    $region4: #{tpu_custom_call.1} parent=1 // pred_region
      _
    $region5: #{tpu_custom_call.1} parent=1 // pred_fallthru
      _
    // Predicated region
    $region6: #{tpu_custom_call.1} parent=1 // pred_check
      _
    $region7: #{tpu_custom_call.1} parent=1 // pred_check_branch
      %14 = sbr.rel (0) target = $region9
    $region8: #{tpu_custom_call.1} parent=1 // pred_region
      _
    $region9: #{tpu_custom_call.1} parent=1 // pred_fallthru
      _
    // Predicated region
    $region10: #{tpu_custom_call.1} parent=1 // pred_check
      _
    $region11: #{tpu_custom_call.1} parent=1 // pred_check_branch
      %16 = sbr.rel (0) target = $region13
    $region12: #{tpu_custom_call.1} parent=1 // pred_region
      _
    $region13: #{tpu_custom_call.1} parent=1 // pred_fallthru
      _
    // Predicated region
    $region14: #{tpu_custom_call.1} parent=1 // pred_check
      _
    $region15: #{tpu_custom_call.1} parent=1 // pred_check_branch
      %18 = sbr.rel (0) target = $region17
    $region16: #{tpu_custom_call.1} parent=1 // pred_region
      _
    $region17: #{tpu_custom_call.1} parent=1 // pred_fallthru
      _
    // Predicated region
    $region18: #{tpu_custom_call.1} parent=1 // pred_check
      _
    $region19: #{tpu_custom_call.1} parent=1 // pred_check_branch
      %20 = sbr.rel (0) target = $region21
    $region20: #{tpu_custom_call.1} parent=1 // pred_region
      _
    $region21: #{tpu_custom_call.1} parent=1 // pred_fallthru
      _
    %v21 = vld [vmem:[%s0] sm:$0xff]
    %v22 = vld [vmem:[%s1] sm:$0xff]
    %v23 = vld [vmem:[%s1 + $0x8] sm:$0xff]
    %v24 = vld [vmem:[%s1 + $0x10] sm:$0xff]
    %v25 = vld [vmem:[%s1 + $0x18] sm:$0xff]
    %v26 = vld [vmem:[%s2] sm:$0x1]
    %v28 = vlaneseq
    %v29 = vshrl.u32 %v28, 7
    %v30 = vsub.s32 0, %v29
    %v31 = vrot.slane %v26, %v30
    %vm33 = vcmask 261120
    %v35 = vsel %vm33, %v21, 0
    %37 = vmatprep.subr.mxu0 0.0
    %38 = vmatpush1.msra.mxu0 %v22
    %39 = vmatprep.subr.mxu0 0.0
    %40 = vmatpush1.msra.mxu0 %v23
    %41 = vmatprep.subr.mxu0 0.0
    %42 = vmatpush1.msra.mxu0 %v24
    %43 = vmatprep.subr.mxu0 0.0
    %44 = vmatpush1.msra.mxu0 %v25
    %45 = vmatprep.subr.mxu0 0.0
    %46 = vmatpush1.msra.mxu0 0.0
    %47 = vmatprep.subr.mxu0 0.0
    %48 = vmatpush1.msra.mxu0 0.0
    %49 = vmatprep.subr.mxu0 0.0
    %50 = vmatpush1.msra.mxu0 0.0
    %51 = vmatprep.subr.mxu0 0.0
    %52 = vmatpush1.msra.mxu0 0.0
    %53 = vmatprep.subr.mxu0 0.0
    %54 = vmatpush1.msra.mxu0 0.0
    %55 = vmatprep.subr.mxu0 0.0
    %56 = vmatpush1.msra.mxu0 0.0
    %57 = vmatprep.subr.mxu0 0.0
    %58 = vmatpush1.msra.mxu0 0.0
    %59 = vmatprep.subr.mxu0 0.0
    %60 = vmatpush1.msra.mxu0 0.0
    %61 = vmatprep.subr.mxu0 0.0
    %62 = vmatpush1.msra.mxu0 0.0
    %63 = vmatprep.subr.mxu0 0.0
    %64 = vmatpush1.msra.mxu0 0.0
    %65 = vmatprep.subr.mxu0 0.0
    %66 = vmatpush1.msra.mxu0 0.0
    %67 = vmatprep.subr.mxu0 0.0
    %68 = vmatpush1.msra.mxu0 0.0
    %69 = vmatprep.subr.mxu0 0.0
    %70 = vmatpush1.msra.mxu0 0.0
    %71 = vmatprep.subr.mxu0 0.0
    %72 = vmatpush1.msra.mxu0 0.0
    %73 = vmatprep.subr.mxu0 0.0
    %74 = vmatpush1.msra.mxu0 0.0
    %75 = vmatprep.subr.mxu0 0.0
    %76 = vmatpush1.msra.mxu0 0.0
    %77 = vmatprep.subr.mxu0 0.0
    %78 = vmatpush1.msra.mxu0 0.0
    %79 = vmatprep.subr.mxu0 0.0
    %80 = vmatpush1.msra.mxu0 0.0
    %81 = vmatprep.subr.mxu0 0.0
    %82 = vmatpush1.msra.mxu0 0.0
    %83 = vmatprep.subr.mxu0 0.0
    %84 = vmatpush1.msra.mxu0 0.0
    %85 = vmatprep.subr.mxu0 0.0
    %86 = vmatpush1.msra.mxu0 0.0
    %87 = vmatprep.subr.mxu0 0.0
    %88 = vmatpush1.msra.mxu0 0.0
    %89 = vmatprep.subr.mxu0 0.0
    %90 = vmatpush1.msra.mxu0 0.0
    %91 = vmatprep.subr.mxu0 0.0
    %92 = vmatpush1.msra.mxu0 0.0
    %93 = vmatprep.subr.mxu0 0.0
    %94 = vmatpush1.msra.mxu0 0.0
    %95 = vmatprep.subr.mxu0 0.0
    %96 = vmatpush1.msra.mxu0 0.0
    %97 = vmatprep.subr.mxu0 0.0
    %98 = vmatpush1.msra.mxu0 0.0
    %99 = vmatprep.subr.mxu0 0.0
    %100 = vmatpush1.msra.mxu0 0.0
    %101 = vmatprep.mubr.f32.mxu0 0.0
    %102 = vmatmul.mubr.f32.gmra.mrb[0].mxu0 %v35
    %v103 = vpop.f32.mrb[0].mxu0
    %v104 = vadd.f32 %v31, %v103
    %v105 = vpop.f32.mrb[0].mxu0
    %106 = vdwg.mxu0
    %v107 = vmax.f32 %v104, 0.0
    %v108 = vld [vmem:[%s3] sm:$0xff]
    %v109 = vld [vmem:[%s3 + $0x8] sm:$0xff]
    %v110 = vld [vmem:[%s3 + $0x10] sm:$0xff]
    %v111 = vld [vmem:[%s3 + $0x18] sm:$0xff]
    %v112 = vld [vmem:[%s3 + $0x20] sm:$0xff]
    %v113 = vld [vmem:[%s3 + $0x28] sm:$0xff]
    %v114 = vld [vmem:[%s3 + $0x30] sm:$0xff]
    %v115 = vld [vmem:[%s3 + $0x38] sm:$0xff]
    %v116 = vld [vmem:[%s3 + $0x40] sm:$0xff]
    %v117 = vld [vmem:[%s3 + $0x48] sm:$0xff]
    %v118 = vld [vmem:[%s3 + $0x50] sm:$0xff]
    %v119 = vld [vmem:[%s3 + $0x58] sm:$0xff]
    %v120 = vld [vmem:[%s3 + $0x60] sm:$0xff]
    %v121 = vld [vmem:[%s3 + $0x68] sm:$0xff]
    %v122 = vld [vmem:[%s3 + $0x70] sm:$0xff]
    %v123 = vld [vmem:[%s3 + $0x78] sm:$0xff]
    %v124 = vld [vmem:[%s4] sm:$0x1]
    %v126 = vlaneseq
    %v127 = vshrl.u32 %v126, 7
    %v128 = vsub.s32 0, %v127
    %v129 = vrot.slane %v124, %v128
    %131 = vmatprep.subr.mxu0 0.0
    %132 = vmatpush1.msra.mxu0 %v108
    %133 = vmatprep.subr.mxu0 0.0
    %134 = vmatpush1.msra.mxu0 %v109
    %135 = vmatprep.subr.mxu0 0.0
    %136 = vmatpush1.msra.mxu0 %v110
    %137 = vmatprep.subr.mxu0 0.0
    %138 = vmatpush1.msra.mxu0 %v111
    %139 = vmatprep.subr.mxu0 0.0
    %140 = vmatpush1.msra.mxu0 %v112
    %141 = vmatprep.subr.mxu0 0.0
    %142 = vmatpush1.msra.mxu0 %v113
    %143 = vmatprep.subr.mxu0 0.0
    %144 = vmatpush1.msra.mxu0 %v114
    %145 = vmatprep.subr.mxu0 0.0
    %146 = vmatpush1.msra.mxu0 %v115
    %147 = vmatprep.subr.mxu0 0.0
    %148 = vmatpush1.msra.mxu0 %v116
    %149 = vmatprep.subr.mxu0 0.0
    %150 = vmatpush1.msra.mxu0 %v117
    %151 = vmatprep.subr.mxu0 0.0
    %152 = vmatpush1.msra.mxu0 %v118
    %153 = vmatprep.subr.mxu0 0.0
    %154 = vmatpush1.msra.mxu0 %v119
    %155 = vmatprep.subr.mxu0 0.0
    %156 = vmatpush1.msra.mxu0 %v120
    %157 = vmatprep.subr.mxu0 0.0
    %158 = vmatpush1.msra.mxu0 %v121
    %159 = vmatprep.subr.mxu0 0.0
    %160 = vmatpush1.msra.mxu0 %v122
    %161 = vmatprep.subr.mxu0 0.0
    %162 = vmatpush1.msra.mxu0 %v123
    %163 = vmatprep.subr.mxu0 0.0
    %164 = vmatpush1.msra.mxu0 0.0
    %165 = vmatprep.subr.mxu0 0.0
    %166 = vmatpush1.msra.mxu0 0.0
    %167 = vmatprep.subr.mxu0 0.0
    %168 = vmatpush1.msra.mxu0 0.0
    %169 = vmatprep.subr.mxu0 0.0
    %170 = vmatpush1.msra.mxu0 0.0
    %171 = vmatprep.subr.mxu0 0.0
    %172 = vmatpush1.msra.mxu0 0.0
    %173 = vmatprep.subr.mxu0 0.0
    %174 = vmatpush1.msra.mxu0 0.0
    %175 = vmatprep.subr.mxu0 0.0
    %176 = vmatpush1.msra.mxu0 0.0
    %177 = vmatprep.subr.mxu0 0.0
    %178 = vmatpush1.msra.mxu0 0.0
    %179 = vmatprep.subr.mxu0 0.0
    %180 = vmatpush1.msra.mxu0 0.0
    %181 = vmatprep.subr.mxu0 0.0
    %182 = vmatpush1.msra.mxu0 0.0
    %183 = vmatprep.subr.mxu0 0.0
    %184 = vmatpush1.msra.mxu0 0.0
    %185 = vmatprep.subr.mxu0 0.0
    %186 = vmatpush1.msra.mxu0 0.0
    %187 = vmatprep.subr.mxu0 0.0
    %188 = vmatpush1.msra.mxu0 0.0
    %189 = vmatprep.subr.mxu0 0.0
    %190 = vmatpush1.msra.mxu0 0.0
    %191 = vmatprep.subr.mxu0 0.0
    %192 = vmatpush1.msra.mxu0 0.0
    %193 = vmatprep.subr.mxu0 0.0
    %194 = vmatpush1.msra.mxu0 0.0
    %195 = vmatprep.mubr.f32.mxu0 0.0
    %196 = vmatmul.mubr.f32.gmra.mrb[0].mxu0 %v107
    %v197 = vpop.f32.mrb[0].mxu0
    %v198 = vadd.f32 %v129, %v197
    %v199 = vpop.f32.mrb[0].mxu0
    %200 = vdwg.mxu0
    %vm201 = vcmask 130048
    %202 = vst.msk [vmem:[#allocation2] sm:$0xff] %vm201, %v198
    // Predicated region
    $region22: #{tpu_custom_call.1} parent=1 // pred_check
      _
    $region23: #{tpu_custom_call.1} parent=1 // pred_check_branch
      %204 = sbr.rel (0) target = $region25
    $region24: #{tpu_custom_call.1} parent=1 // pred_region
      %s206 = ssub.s32 128, 128
      %207 = vsyncadd [#allocation3], %s206
      %s209 = sshll.u32 [#allocation2], 4
      %s210 = int_to_ptr.vmem [resolvable:$true] %s209
      %212 = dma.vmem_to_hbm [thread:$0]  %s210, 128, %s5, [#allocation3]
    $region25: #{tpu_custom_call.1} parent=1 // pred_fallthru
      _
    // Predicated region
    $region26: #{tpu_custom_call.1} parent=1 // pred_check
      _
    $region27: #{tpu_custom_call.1} parent=1 // pred_check_branch
      %214 = sbr.rel (0) target = $region29
    $region28: #{tpu_custom_call.1} parent=1 // pred_region
      %215 = dma.done [#allocation3], 128
    $region29: #{tpu_custom_call.1} parent=1 // pred_fallthru
      _
    %216 = vsyncpa [#allocation3], 1

// kernel: tpu_custom_call.1
$region0: #{tpu_custom_call.1}
  #allocation0 [shape = 'u32[]', space=smem, size = 0x4, offset = 0x4, fixed_abs, tag = 'smem constant byte address 0x4 - core index']
  #allocation1 [shape = 'u32[144,128]{1,0:T(1,128)}', space=vmem, size = 0x12000, scoped, tag = 'internal scratch']
  %s0 = inlined_call_operand.vmem [shape: f32[8,32], index: 0, kind: input, shape index: {}]
  %s1 = inlined_call_operand.vmem [shape: f32[32,128], index: 1, kind: input, shape index: {}]
  %s2 = inlined_call_operand.vmem [shape: f32[1,128], index: 2, kind: input, shape index: {}]
  %s3 = inlined_call_operand.vmem [shape: f32[128,16], index: 3, kind: input, shape index: {}]
  %s4 = inlined_call_operand.vmem [shape: f32[1,16], index: 4, kind: input, shape index: {}]
  %s5 = inlined_call_operand.hbm [shape: f32[8,16], index: 5, kind: output, shape index: {}]
  %s6 = sld [smem:[#allocation0]]
  $region30: #{tpu_custom_call.1} parent=0
    _
  %s8 = ssub.s32 1, %s6
  %s9 = scalar_select 0, %s8, %s6
  $region1: #{tpu_custom_call.1} parent=0
    #allocation2 [shape = 'u8[4096]{0}', space=vmem, size = 0x1000, scoped, tag = 'output window, operand 0, single buffered']
    #allocation3 [shape = 's32[1]{0}', space=sflag, size = 0x4, scoped, tag = 'scoped memory for tpu_custom_call.1']
    %10 = vsyncpa [#allocation3], 0
    // Predicated region
    $region2: #{tpu_custom_call.1} parent=1 // pred_check
      _
    $region3: #{tpu_custom_call.1} parent=1 // pred_check_branch
      %12 = sbr.rel (0) target = $region5
    $region4: #{tpu_custom_call.1} parent=1 // pred_region
      _
    $region5: #{tpu_custom_call.1} parent=1 // pred_fallthru
      _
    // Predicated region
    $region6: #{tpu_custom_call.1} parent=1 // pred_check
      _
    $region7: #{tpu_custom_call.1} parent=1 // pred_check_branch
      %14 = sbr.rel (0) target = $region9
    $region8: #{tpu_custom_call.1} parent=1 // pred_region
      _
    $region9: #{tpu_custom_call.1} parent=1 // pred_fallthru
      _
    // Predicated region
    $region10: #{tpu_custom_call.1} parent=1 // pred_check
      _
    $region11: #{tpu_custom_call.1} parent=1 // pred_check_branch
      %16 = sbr.rel (0) target = $region13
    $region12: #{tpu_custom_call.1} parent=1 // pred_region
      _
    $region13: #{tpu_custom_call.1} parent=1 // pred_fallthru
      _
    // Predicated region
    $region14: #{tpu_custom_call.1} parent=1 // pred_check
      _
    $region15: #{tpu_custom_call.1} parent=1 // pred_check_branch
      %18 = sbr.rel (0) target = $region17
    $region16: #{tpu_custom_call.1} parent=1 // pred_region
      _
    $region17: #{tpu_custom_call.1} parent=1 // pred_fallthru
      _
    // Predicated region
    $region18: #{tpu_custom_call.1} parent=1 // pred_check
      _
    $region19: #{tpu_custom_call.1} parent=1 // pred_check_branch
      %20 = sbr.rel (0) target = $region21
    $region20: #{tpu_custom_call.1} parent=1 // pred_region
      _
    $region21: #{tpu_custom_call.1} parent=1 // pred_fallthru
      _
    %v21 = vld [vmem:[%s0] sm:$0xff]
    %v22 = vld [vmem:[%s1] sm:$0xff]
    %v23 = vld [vmem:[%s1 + $0x8] sm:$0xff]
    %v24 = vld [vmem:[%s1 + $0x10] sm:$0xff]
    %v25 = vld [vmem:[%s1 + $0x18] sm:$0xff]
    %v26 = vld [vmem:[%s2] sm:$0x1]
    %v28 = vlaneseq
    %v29 = vshrl.u32 %v28, 7
    %v30 = vsub.s32 0, %v29
    %v31 = vrot.slane %v26, %v30
    %vm33 = vcmask 261120
    %v35 = vsel %vm33, %v21, 0
    %37 = vmatprep.subr.mxu0 0.0
    %38 = vmatpush1.msra.mxu0 %v22
    %39 = vmatprep.subr.mxu0 0.0
    %40 = vmatpush1.msra.mxu0 %v23
    %41 = vmatprep.subr.mxu0 0.0
    %42 = vmatpush1.msra.mxu0 %v24
    %43 = vmatprep.subr.mxu0 0.0
    %44 = vmatpush1.msra.mxu0 %v25
    %45 = vmatprep.subr.mxu0 0.0
    %46 = vmatpush1.msra.mxu0 0.0
    %47 = vmatprep.subr.mxu0 0.0
    %48 = vmatpush1.msra.mxu0 0.0
    %49 = vmatprep.subr.mxu0 0.0
    %50 = vmatpush1.msra.mxu0 0.0
    %51 = vmatprep.subr.mxu0 0.0
    %52 = vmatpush1.msra.mxu0 0.0
    %53 = vmatprep.subr.mxu0 0.0
    %54 = vmatpush1.msra.mxu0 0.0
    %55 = vmatprep.subr.mxu0 0.0
    %56 = vmatpush1.msra.mxu0 0.0
    %57 = vmatprep.subr.mxu0 0.0
    %58 = vmatpush1.msra.mxu0 0.0
    %59 = vmatprep.subr.mxu0 0.0
    %60 = vmatpush1.msra.mxu0 0.0
    %61 = vmatprep.subr.mxu0 0.0
    %62 = vmatpush1.msra.mxu0 0.0
    %63 = vmatprep.subr.mxu0 0.0
    %64 = vmatpush1.msra.mxu0 0.0
    %65 = vmatprep.subr.mxu0 0.0
    %66 = vmatpush1.msra.mxu0 0.0
    %67 = vmatprep.subr.mxu0 0.0
    %68 = vmatpush1.msra.mxu0 0.0
    %69 = vmatprep.subr.mxu0 0.0
    %70 = vmatpush1.msra.mxu0 0.0
    %71 = vmatprep.subr.mxu0 0.0
    %72 = vmatpush1.msra.mxu0 0.0
    %73 = vmatprep.subr.mxu0 0.0
    %74 = vmatpush1.msra.mxu0 0.0
    %75 = vmatprep.subr.mxu0 0.0
    %76 = vmatpush1.msra.mxu0 0.0
    %77 = vmatprep.subr.mxu0 0.0
    %78 = vmatpush1.msra.mxu0 0.0
    %79 = vmatprep.subr.mxu0 0.0
    %80 = vmatpush1.msra.mxu0 0.0
    %81 = vmatprep.subr.mxu0 0.0
    %82 = vmatpush1.msra.mxu0 0.0
    %83 = vmatprep.subr.mxu0 0.0
    %84 = vmatpush1.msra.mxu0 0.0
    %85 = vmatprep.subr.mxu0 0.0
    %86 = vmatpush1.msra.mxu0 0.0
    %87 = vmatprep.subr.mxu0 0.0
    %88 = vmatpush1.msra.mxu0 0.0
    %89 = vmatprep.subr.mxu0 0.0
    %90 = vmatpush1.msra.mxu0 0.0
    %91 = vmatprep.subr.mxu0 0.0
    %92 = vmatpush1.msra.mxu0 0.0
    %93 = vmatprep.subr.mxu0 0.0
    %94 = vmatpush1.msra.mxu0 0.0
    %95 = vmatprep.subr.mxu0 0.0
    %96 = vmatpush1.msra.mxu0 0.0
    %97 = vmatprep.subr.mxu0 0.0
    %98 = vmatpush1.msra.mxu0 0.0
    %99 = vmatprep.subr.mxu0 0.0
    %100 = vmatpush1.msra.mxu0 0.0
    %101 = vmatprep.mubr.f32.mxu0 0.0
    %102 = vmatmul.mubr.f32.gmra.mrb[0].mxu0 %v35
    %v103 = vpop.f32.mrb[0].mxu0
    %v104 = vadd.f32 %v31, %v103
    %v105 = vpop.f32.mrb[0].mxu0
    %106 = vdwg.mxu0
    %v107 = vmax.f32 %v104, 0.0
    %v108 = vld [vmem:[%s3] sm:$0xff]
    %v109 = vld [vmem:[%s3 + $0x8] sm:$0xff]
    %v110 = vld [vmem:[%s3 + $0x10] sm:$0xff]
    %v111 = vld [vmem:[%s3 + $0x18] sm:$0xff]
    %v112 = vld [vmem:[%s3 + $0x20] sm:$0xff]
    %v113 = vld [vmem:[%s3 + $0x28] sm:$0xff]
    %v114 = vld [vmem:[%s3 + $0x30] sm:$0xff]
    %v115 = vld [vmem:[%s3 + $0x38] sm:$0xff]
    %v116 = vld [vmem:[%s3 + $0x40] sm:$0xff]
    %v117 = vld [vmem:[%s3 + $0x48] sm:$0xff]
    %v118 = vld [vmem:[%s3 + $0x50] sm:$0xff]
    %v119 = vld [vmem:[%s3 + $0x58] sm:$0xff]
    %v120 = vld [vmem:[%s3 + $0x60] sm:$0xff]
    %v121 = vld [vmem:[%s3 + $0x68] sm:$0xff]
    %v122 = vld [vmem:[%s3 + $0x70] sm:$0xff]
    %v123 = vld [vmem:[%s3 + $0x78] sm:$0xff]
    %v124 = vld [vmem:[%s4] sm:$0x1]
    %v126 = vlaneseq
    %v127 = vshrl.u32 %v126, 7
    %v128 = vsub.s32 0, %v127
    %v129 = vrot.slane %v124, %v128
    %131 = vmatprep.subr.mxu0 0.0
    %132 = vmatpush1.msra.mxu0 %v108
    %133 = vmatprep.subr.mxu0 0.0
    %134 = vmatpush1.msra.mxu0 %v109
    %135 = vmatprep.subr.mxu0 0.0
    %136 = vmatpush1.msra.mxu0 %v110
    %137 = vmatprep.subr.mxu0 0.0
    %138 = vmatpush1.msra.mxu0 %v111
    %139 = vmatprep.subr.mxu0 0.0
    %140 = vmatpush1.msra.mxu0 %v112
    %141 = vmatprep.subr.mxu0 0.0
    %142 = vmatpush1.msra.mxu0 %v113
    %143 = vmatprep.subr.mxu0 0.0
    %144 = vmatpush1.msra.mxu0 %v114
    %145 = vmatprep.subr.mxu0 0.0
    %146 = vmatpush1.msra.mxu0 %v115
    %147 = vmatprep.subr.mxu0 0.0
    %148 = vmatpush1.msra.mxu0 %v116
    %149 = vmatprep.subr.mxu0 0.0
    %150 = vmatpush1.msra.mxu0 %v117
    %151 = vmatprep.subr.mxu0 0.0
    %152 = vmatpush1.msra.mxu0 %v118
    %153 = vmatprep.subr.mxu0 0.0
    %154 = vmatpush1.msra.mxu0 %v119
    %155 = vmatprep.subr.mxu0 0.0
    %156 = vmatpush1.msra.mxu0 %v120
    %157 = vmatprep.subr.mxu0 0.0
    %158 = vmatpush1.msra.mxu0 %v121
    %159 = vmatprep.subr.mxu0 0.0
    %160 = vmatpush1.msra.mxu0 %v122
    %161 = vmatprep.subr.mxu0 0.0
    %162 = vmatpush1.msra.mxu0 %v123
    %163 = vmatprep.subr.mxu0 0.0
    %164 = vmatpush1.msra.mxu0 0.0
    %165 = vmatprep.subr.mxu0 0.0
    %166 = vmatpush1.msra.mxu0 0.0
    %167 = vmatprep.subr.mxu0 0.0
    %168 = vmatpush1.msra.mxu0 0.0
    %169 = vmatprep.subr.mxu0 0.0
    %170 = vmatpush1.msra.mxu0 0.0
    %171 = vmatprep.subr.mxu0 0.0
    %172 = vmatpush1.msra.mxu0 0.0
    %173 = vmatprep.subr.mxu0 0.0
    %174 = vmatpush1.msra.mxu0 0.0
    %175 = vmatprep.subr.mxu0 0.0
    %176 = vmatpush1.msra.mxu0 0.0
    %177 = vmatprep.subr.mxu0 0.0
    %178 = vmatpush1.msra.mxu0 0.0
    %179 = vmatprep.subr.mxu0 0.0
    %180 = vmatpush1.msra.mxu0 0.0
    %181 = vmatprep.subr.mxu0 0.0
    %182 = vmatpush1.msra.mxu0 0.0
    %183 = vmatprep.subr.mxu0 0.0
    %184 = vmatpush1.msra.mxu0 0.0
    %185 = vmatprep.subr.mxu0 0.0
    %186 = vmatpush1.msra.mxu0 0.0
    %187 = vmatprep.subr.mxu0 0.0
    %188 = vmatpush1.msra.mxu0 0.0
    %189 = vmatprep.subr.mxu0 0.0
    %190 = vmatpush1.msra.mxu0 0.0
    %191 = vmatprep.subr.mxu0 0.0
    %192 = vmatpush1.msra.mxu0 0.0
    %193 = vmatprep.subr.mxu0 0.0
    %194 = vmatpush1.msra.mxu0 0.0
    %195 = vmatprep.mubr.f32.mxu0 0.0
    %196 = vmatmul.mubr.f32.gmra.mrb[0].mxu0 %v107
    %v197 = vpop.f32.mrb[0].mxu0
    %v198 = vadd.f32 %v129, %v197
    %v199 = vpop.f32.mrb[0].mxu0
    %200 = vdwg.mxu0
    %vm201 = vcmask 130048
    %202 = vst.msk [vmem:[#allocation2] sm:$0xff] %vm201, %v198
    // Predicated region
    $region22: #{tpu_custom_call.1} parent=1 // pred_check
      _
    $region23: #{tpu_custom_call.1} parent=1 // pred_check_branch
      %204 = sbr.rel (0) target = $region25
    $region24: #{tpu_custom_call.1} parent=1 // pred_region
      %s206 = ssub.s32 128, 128
      %207 = vsyncadd [#allocation3], %s206
      %s209 = sshll.u32 [#allocation2], 4
      %s210 = int_to_ptr.vmem [resolvable:$true] %s209
      %212 = dma.vmem_to_hbm [thread:$0]  %s210, 128, %s5, [#allocation3]
    $region25: #{tpu_custom_call.1} parent=1 // pred_fallthru
      _
    // Predicated region
    $region26: #{tpu_custom_call.1} parent=1 // pred_check
      _
    $region27: #{tpu_custom_call.1} parent=1 // pred_check_branch
      %214 = sbr.rel (0) target = $region29
    $region28: #{tpu_custom_call.1} parent=1 // pred_region
      %215 = dma.done [#allocation3], 128
    $region29: #{tpu_custom_call.1} parent=1 // pred_fallthru
      _
    %216 = vsyncpa [#allocation3], 1

</llo_original>
